<compile_context>
chip_gen: v6e
topology: v6e:2x2x1
jax: 0.10.0
libtpu: 0.0.40
codegen_flags: <defaults>
</compile_context>

<pallas_src>
import jax
import jax.numpy as jnp
from jax.experimental import pallas as pl
from jax.experimental.pallas import tpu as pltpu

MARGIN = 1.0
EPS = 1e-6                       # nn.PairwiseDistance default eps
_MIN_PALLAS_BYTES = 256 * 1024   # below this per-input size, pure JAX (XLA fusion) wins


def triplet_loss_ref(anchor, positive, negative, margin=MARGIN):
    # Pure-JAX reference matching torch semantics (also the tiny-input fast path).
    anchor = anchor.astype(jnp.float32)
    positive = positive.astype(jnp.float32)
    negative = negative.astype(jnp.float32)
    d_ap = jnp.sqrt(jnp.sum((anchor - positive + EPS) ** 2, axis=-1))
    d_an = jnp.sqrt(jnp.sum((anchor - negative + EPS) ** 2, axis=-1))
    return jnp.mean(jnp.maximum(d_ap - d_an + margin, 0.0))


def _tpu_vmem_capacity_bytes():
    """Per-TensorCore physical VMEM: 128 MiB on v5e/v6e, 64 MiB on v7x."""
    try:
        info = pltpu.get_tpu_info()
        cap = getattr(info, "vmem_capacity_bytes", None)
        if cap:
            return int(cap)
    except Exception:
        pass
    try:
        kind = jax.devices()[0].device_kind.lower()
        if "v7" in kind:
            return 64 << 20
        if "v5" in kind or "v6" in kind:
            return 128 << 20
    except Exception:
        pass
    return 64 << 20  # conservative default (assume smallest VMEM generation)


def _pick_tiling(B, D, itemsize, sublane):
    """Return (batch_tile, vmem_limit_bytes) sized for the current TPU generation."""
    cap = _tpu_vmem_capacity_bytes()
    if cap >= (128 << 20):
        vmem_limit = 96 << 20     # v5e / v6e: large scoped limit under 128 MiB physical
    else:
        vmem_limit = 56 << 20     # v7x: 64 MiB physical per TensorCore
    budget = (vmem_limit * 2) // 3
    # Live VMEM per batch row:
    #   2 pipeline buffers x 3 inputs at native dtype
    # + ~4 materialized (TB, D) f32 intermediates in the body (upcasts / diffs / squares).
    per_row = D * (2 * 3 * itemsize + 4 * 4)
    tb = budget // per_row
    tb = max(sublane, (min(tb, 8192) // sublane) * sublane)
    b_pad = ((B + sublane - 1) // sublane) * sublane
    return min(tb, b_pad), vmem_limit


def triplet_loss(anchor, positive, negative, *, margin=MARGIN, tb=None):
    B, D = anchor.shape

    # Keep bf16 native (halves HBM traffic); everything else computes in f32.
    compute_dtype = jnp.bfloat16 if anchor.dtype == jnp.bfloat16 else jnp.float32
    anchor = anchor.astype(compute_dtype)
    positive = positive.astype(compute_dtype)
    negative = negative.astype(compute_dtype)
    itemsize = jnp.dtype(compute_dtype).itemsize
    sublane = 16 if compute_dtype == jnp.bfloat16 else 8

    # Tiny problems: pallas_call / DMA overhead dominates -- let XLA fuse it.
    if tb is None and B * D * itemsize < _MIN_PALLAS_BYTES:
        return triplet_loss_ref(anchor, positive, negative, margin)

    auto_tb, vmem_limit = _pick_tiling(B, D, itemsize, sublane)
    if tb is None:
        tb = auto_tb
    assert tb % sublane == 0, (
        f"batch tile ({tb}) must be a multiple of the sublane pack factor ({sublane}) "
        f"for dtype {compute_dtype}"
    )

    nb_total = pl.cdiv(B, tb)       # total batch blocks == grid size
    ragged = (B % tb) != 0          # static: only emit masking code when needed

    def kernel(a_ref, p_ref, n_ref, out_ref):
        a = a_ref[...].astype(jnp.float32)
        p = p_ref[...].astype(jnp.float32)
        n = n_ref[...].astype(jnp.float32)

        # PyTorch PairwiseDistance adds eps to the diff before the norm.
        diff_ap = a - p + EPS
        diff_an = a - n + EPS
        sq_ap = jnp.sum(diff_ap * diff_ap, axis=-1, keepdims=True)  # (tb, 1)
        sq_an = jnp.sum(diff_an * diff_an, axis=-1, keepdims=True)  # (tb, 1)

        if ragged:
            # Padded rows of the last tile hold uninitialized VMEM; zero their squared
            # sums before sqrt (no Inf/NaN can leak) and their hinge contribution after.
            row = pl.program_id(0) * tb + jax.lax.broadcasted_iota(jnp.int32, (tb, 1), 0)
            valid = row < B
            sq_ap = jnp.where(valid, sq_ap, 0.0)
            sq_an = jnp.where(valid, sq_an, 0.0)

        per_row = jnp.maximum(jnp.sqrt(sq_ap) - jnp.sqrt(sq_an) + margin, 0.0)  # (tb, 1)
        if ragged:
            per_row = jnp.where(valid, per_row, 0.0)

        # Lane-dense (8, 128) slab per block: broadcast this block's hinge sum.
        out_ref[...] = jnp.zeros(out_ref.shape, jnp.float32) + jnp.sum(per_row)

    in_spec = pl.BlockSpec((tb, D), lambda i: (i, 0))

    partials = pl.pallas_call(
        kernel,
        grid=(nb_total,),
        in_specs=[in_spec, in_spec, in_spec],
        out_specs=pl.BlockSpec((1, 8, 128), lambda i: (i, 0, 0)),
        out_shape=jax.ShapeDtypeStruct((nb_total, 8, 128), jnp.float32),
        compiler_params=pltpu.CompilerParams(
            dimension_semantics=("parallel",),
            vmem_limit_bytes=vmem_limit,
        ),
    )(anchor, positive, negative)

    # Each block's slab holds its hinge sum broadcast over (8, 128); sum and normalize.
    return jnp.sum(partials[:, 0, 0]) / B


if __name__ == "__main__":
    key = jax.random.PRNGKey(0)
    k1, k2, k3 = jax.random.split(key, 3)

    # Ragged multi-block case (B not a multiple of the tile) exercises masking and the
    # per-block slab reduction.
    B, D = 520, 256
    anchor = jax.random.normal(k1, (B, D), dtype=jnp.float32)
    positive = jax.random.normal(k2, (B, D), dtype=jnp.float32)
    negative = jax.random.normal(k3, (B, D), dtype=jnp.float32)

    out = triplet_loss(anchor, positive, negative, tb=128)  # 5 blocks, ragged tail
    jax.block_until_ready(out)
    ref = triplet_loss_ref(anchor, positive, negative)
    assert jnp.allclose(out, ref, rtol=1e-5, atol=1e-5), (out, ref)

    # Auto-sized (generation-aware) tiling path: single big block, no masking.
    out_auto = triplet_loss(anchor, positive, negative)
    jax.block_until_ready(out_auto)
    assert jnp.allclose(out_auto, ref, rtol=1e-5, atol=1e-5), (out_auto, ref)

    # Native-bf16 DMA path (inputs stay bf16 in HBM, upcast to f32 inside the kernel).
    Bb, Db = 512, 256
    a_bf = jax.random.normal(k1, (Bb, Db), dtype=jnp.float32).astype(jnp.bfloat16)
    p_bf = jax.random.normal(k2, (Bb, Db), dtype=jnp.float32).astype(jnp.bfloat16)
    n_bf = jax.random.normal(k3, (Bb, Db), dtype=jnp.float32).astype(jnp.bfloat16)
    out_bf = triplet_loss(a_bf, p_bf, n_bf, tb=160)  # 4 blocks, ragged tail, bf16 tiles
    jax.block_until_ready(out_bf)
    ref_bf = triplet_loss_ref(a_bf, p_bf, n_bf)      # same bf16 inputs, f32 math
    assert jnp.allclose(out_bf, ref_bf, rtol=1e-4, atol=1e-4), (out_bf, ref_bf)

    # Tiny shape takes the pure-JAX fallback (pallas_call overhead would dominate).
    small = [jax.random.normal(k, (8, 128), dtype=jnp.float32) for k in (k1, k2, k3)]
    out_small = triplet_loss(*small)
    jax.block_until_ready(out_small)
    ref_small = triplet_loss_ref(*small)
    assert jnp.allclose(out_small, ref_small, rtol=1e-5, atol=1e-5), (out_small, ref_small)

    print("KERNEL_OK")
</pallas_src>

<mosaic_0001>
module attributes {stable_mosaic.version = 11 : i64} {
  func.func @kernel(%arg0: i32, %arg1: memref<128x256xf32, #tpu.memory_space<vmem>>, %arg2: memref<128x256xf32, #tpu.memory_space<vmem>>, %arg3: memref<128x256xf32, #tpu.memory_space<vmem>>, %arg4: memref<1x8x128xf32, #tpu.memory_space<vmem>>) attributes {dimension_semantics = [#tpu.dimension_semantics<parallel>], iteration_bounds = array<i64: 5>, scalar_prefetch = 0 : i64, scratch_operands = 0 : i64, tpu.core_type = #tpu.core_type<tc>, window_params = [{transform_indices = @transform_0, window_bounds = array<i64: 128, 256>}, {transform_indices = @transform_1, window_bounds = array<i64: 128, 256>}, {transform_indices = @transform_2, window_bounds = array<i64: 128, 256>}, {transform_indices = @transform_3, window_bounds = array<i64: 1, 8, 128>}]} {
    %c0 = arith.constant 0 : index
    %c0_0 = arith.constant 0 : index
    %0 = vector.load %arg1[%c0, %c0_0] : memref<128x256xf32, #tpu.memory_space<vmem>>, vector<128x256xf32>
    %c0_1 = arith.constant 0 : index
    %c0_2 = arith.constant 0 : index
    %1 = vector.load %arg2[%c0_1, %c0_2] : memref<128x256xf32, #tpu.memory_space<vmem>>, vector<128x256xf32>
    %c0_3 = arith.constant 0 : index
    %c0_4 = arith.constant 0 : index
    %2 = vector.load %arg3[%c0_3, %c0_4] : memref<128x256xf32, #tpu.memory_space<vmem>>, vector<128x256xf32>
    %3 = arith.subf %0, %1 : vector<128x256xf32>
    %cst = arith.constant 9.99999997E-7 : f32
    %4 = vector.broadcast %cst : f32 to vector<128x256xf32>
    %5 = arith.addf %3, %4 : vector<128x256xf32>
    %6 = arith.subf %0, %2 : vector<128x256xf32>
    %cst_5 = arith.constant 9.99999997E-7 : f32
    %7 = vector.broadcast %cst_5 : f32 to vector<128x256xf32>
    %8 = arith.addf %6, %7 : vector<128x256xf32>
    %9 = arith.mulf %5, %5 : vector<128x256xf32>
    %cst_6 = arith.constant dense<0.000000e+00> : vector<128xf32>
    %10 = vector.multi_reduction <add>, %9, %cst_6 [1] : vector<128x256xf32> to vector<128xf32>
    %11 = vector.shape_cast %10 : vector<128xf32> to vector<128x1xf32>
    %12 = arith.mulf %8, %8 : vector<128x256xf32>
    %cst_7 = arith.constant dense<0.000000e+00> : vector<128xf32>
    %13 = vector.multi_reduction <add>, %12, %cst_7 [1] : vector<128x256xf32> to vector<128xf32>
    %14 = vector.shape_cast %13 : vector<128xf32> to vector<128x1xf32>
    %c128_i32 = arith.constant 128 : i32
    %15 = arith.muli %arg0, %c128_i32 : i32
    %16 = tpu.iota {dimensions = array<i32: 0>} : vector<128x1xi32>
    %17 = vector.broadcast %15 : i32 to vector<128x1xi32>
    %18 = arith.addi %17, %16 : vector<128x1xi32>
    %c520_i32 = arith.constant 520 : i32
    %19 = vector.broadcast %c520_i32 : i32 to vector<128x1xi32>
    %20 = arith.cmpi slt, %18, %19 : vector<128x1xi32>
    %cst_8 = arith.constant 0.000000e+00 : f32
    %21 = vector.broadcast %cst_8 : f32 to vector<128x1xf32>
    %22 = arith.select %20, %11, %21 : vector<128x1xi1>, vector<128x1xf32>
    %cst_9 = arith.constant 0.000000e+00 : f32
    %23 = vector.broadcast %cst_9 : f32 to vector<128x1xf32>
    %24 = arith.select %20, %14, %23 : vector<128x1xi1>, vector<128x1xf32>
    %25 = math.sqrt %22 : vector<128x1xf32>
    %26 = math.sqrt %24 : vector<128x1xf32>
    %27 = arith.subf %25, %26 : vector<128x1xf32>
    %cst_10 = arith.constant 1.000000e+00 : f32
    %28 = vector.broadcast %cst_10 : f32 to vector<128x1xf32>
    %29 = arith.addf %27, %28 : vector<128x1xf32>
    %cst_11 = arith.constant 0.000000e+00 : f32
    %30 = vector.broadcast %cst_11 : f32 to vector<128x1xf32>
    %31 = arith.maximumf %29, %30 : vector<128x1xf32>
    %cst_12 = arith.constant 0.000000e+00 : f32
    %32 = vector.broadcast %cst_12 : f32 to vector<128x1xf32>
    %33 = arith.select %20, %31, %32 : vector<128x1xi1>, vector<128x1xf32>
    %cst_13 = arith.constant 0.000000e+00 : f32
    %34 = vector.broadcast %cst_13 : f32 to vector<1x8x128xf32>
    %35 = vector.shape_cast %33 : vector<128x1xf32> to vector<1x128x1xf32>
    %cst_14 = arith.constant dense<0.000000e+00> : vector<1xf32>
    %36 = vector.multi_reduction <add>, %35, %cst_14 [1, 2] : vector<1x128x1xf32> to vector<1xf32>
    %37 = vector.shape_cast %36 : vector<1xf32> to vector<1x1x1xf32>
    %38 = vector.extract %37[0, 0, 0] : f32 from vector<1x1x1xf32>
    %39 = vector.broadcast %38 : f32 to vector<1x8x128xf32>
    %40 = arith.addf %34, %39 : vector<1x8x128xf32>
    %c0_15 = arith.constant 0 : index
    %c0_16 = arith.constant 0 : index
    %c0_17 = arith.constant 0 : index
    %41 = vector.load %arg4[%c0_15, %c0_16, %c0_17] : memref<1x8x128xf32, #tpu.memory_space<vmem>>, vector<1x8x128xf32>
    tpu.vector_store %arg4[%c0_15, %c0_16, %c0_17], %40 {strides = array<i32>} : memref<1x8x128xf32, #tpu.memory_space<vmem>>, vector<1x8x128xf32>,
    return
  }
  func.func @transform_0(%arg0: i32) -> (i32, i32) {
    %c0_i32 = arith.constant 0 : i32
    %c0_i32_0 = arith.constant 0 : i32
    return %arg0, %c0_i32 : i32, i32
  }
  func.func @transform_1(%arg0: i32) -> (i32, i32) {
    %c0_i32 = arith.constant 0 : i32
    %c0_i32_0 = arith.constant 0 : i32
    return %arg0, %c0_i32 : i32, i32
  }
  func.func @transform_2(%arg0: i32) -> (i32, i32) {
    %c0_i32 = arith.constant 0 : i32
    %c0_i32_0 = arith.constant 0 : i32
    return %arg0, %c0_i32 : i32, i32
  }
  func.func @transform_3(%arg0: i32) -> (i32, i32, i32) {
    %c0_i32 = arith.constant 0 : i32
    %c0_i32_0 = arith.constant 0 : i32
    %c0_i32_1 = arith.constant 0 : i32
    return %arg0, %c0_i32, %c0_i32_0 : i32, i32, i32
  }
}

</mosaic_0001>

<llo_original>
// kernel: tpu_custom_call.1
$region0: #{tpu_custom_call.1}
  #allocation0 [shape = 'u32[]', space=smem, size = 0x4, offset = 0x4, fixed_abs, tag = 'smem constant byte address 0x4 - core index']
  #allocation1 [shape = 'u32[144,128]{1,0:T(1,128)}', space=vmem, size = 0x12000, scoped, tag = 'internal scratch']
  %s0 = inlined_call_operand.hbm [shape: f32[520,256], index: 0, kind: input, shape index: {}]
  %s1 = inlined_call_operand.hbm [shape: f32[520,256], index: 1, kind: input, shape index: {}]
  %s2 = inlined_call_operand.hbm [shape: f32[520,256], index: 2, kind: input, shape index: {}]
  %s3 = inlined_call_operand.hbm [shape: f32[5,8,128], index: 3, kind: output, shape index: {}]
  %s4 = sld [smem:[#allocation0]]
  $region57: #{tpu_custom_call.1} parent=0
    _
  %s6 = ssub.s32 1, %s4
  %s7 = scalar_select 0, %s6, %s4
  $region1: #{tpu_custom_call.1} parent=0
    #allocation2 [shape = 'u8[262144]{0}', space=vmem, size = 0x40000, scoped, tag = 'input window, operand 0']
    #allocation3 [shape = 's32[2]{0}', space=sflag, size = 0x8, scoped, tag = 'scoped memory for tpu_custom_call.1']
    #allocation4 [shape = 's32[2]{0}', space=sflag, size = 0x8, scoped, tag = 'scoped memory for tpu_custom_call.1']
    #allocation5 [shape = 'u8[262144]{0}', space=vmem, size = 0x40000, scoped, tag = 'input window, operand 1']
    #allocation6 [shape = 's32[2]{0}', space=sflag, size = 0x8, scoped, tag = 'scoped memory for tpu_custom_call.1']
    #allocation7 [shape = 'u8[262144]{0}', space=vmem, size = 0x40000, scoped, tag = 'input window, operand 2']
    #allocation8 [shape = 'u8[8192]{0}', space=vmem, size = 0x2000, scoped, tag = 'output window, operand 0']
    %8 = vsyncpa [#allocation3], 0
    %s9 = scalar_lea.sflag [#allocation3], 1
    %10 = vsyncpa %s9, 0
    %11 = vsyncpa [#allocation6], 0
    %s12 = scalar_lea.sflag [#allocation6], 1
    %13 = vsyncpa %s12, 0
    %14 = vsyncpa [#allocation4], 0
    %s15 = scalar_lea.sflag [#allocation4], 1
    %16 = vsyncpa %s15, 0
    loop: start=0, step=1, limit=7
    $region2: #{tpu_custom_call.1} parent=1 // loop_pre_header
      _
    $region3: #{tpu_custom_call.1} parent=1 // loop_header
      %s18 = sphi 0, %s22
      %p19 = scmp.ge.s32.totalorder %s18, 7
      %s28 = sphi 0, %s30
      %s31 = sphi 0, %s28
      %s32 = sphi 0, %s31
      %s48 = sphi 0, %s32
      %s54 = sphi 0, %s56
      %s57 = sphi 0, %s54
      %s58 = sphi 0, %s57
      %s74 = sphi 0, %s58
      %s80 = sphi 0, %s82
      %s83 = sphi 0, %s80
      %s84 = sphi 0, %s83
      %s100 = sphi 0, %s84
      %s106 = sphi 0, %s108
      %s109 = sphi 0, %s106
      %s110 = sphi 0, %s109
      %s126 = sphi 0, %s110
    $region4: #{tpu_custom_call.1} parent=1 // loop_header_branch
      %21 = sbr.rel (%p19) target = $region8
    $region5: #{tpu_custom_call.1} parent=1 // loop_body
      %s23 = ssub.s32 %s18, 1
      %s24 = ssub.s32 %s18, 2
      %s25 = sadd.s32 %s18, 1
      %s26 = ssub.s32 %s18, %s25
      %p27 = scmp.eq.s32.totalorder %s26, 0
      %s29 = sadd.s32 %s28, 1
      %s30 = scalar_select %p27, %s28, %s29
      %p33 = pneg %p27
      %p34 = scmp.eq.s32.totalorder %s18, 4
      %p35 = por %p33, %p34
      %p36 = scmp.ne.s32.totalorder %s28, %s31
      %p37 = scmp.eq.s32.totalorder %s18, 0
      %p38 = por %p36, %p37
      %p39 = scmp.ne.s32.totalorder %s28, %s31
      %p40 = scmp.eq.s32.totalorder %s23, 4
      %p41 = por %p39, %p40
      %p42 = scmp.ne.s32.totalorder %s31, %s32
      %p43 = scmp.eq.s32.totalorder %s23, 0
      %p44 = por %p42, %p43
      %p45 = scmp.ne.s32.totalorder %s31, %s32
      %p46 = scmp.eq.s32.totalorder %s24, 4
      %p47 = por %p45, %p46
      %p49 = scmp.ne.s32.totalorder %s32, %s48
      %p50 = scmp.eq.s32.totalorder %s24, 0
      %p51 = por %p49, %p50
      %s52 = ssub.s32 %s18, %s25
      %p53 = scmp.eq.s32.totalorder %s52, 0
      %s55 = sadd.s32 %s54, 1
      %s56 = scalar_select %p53, %s54, %s55
      %p59 = pneg %p53
      %p60 = scmp.eq.s32.totalorder %s18, 4
      %p61 = por %p59, %p60
      %p62 = scmp.ne.s32.totalorder %s54, %s57
      %p63 = scmp.eq.s32.totalorder %s18, 0
      %p64 = por %p62, %p63
      %p65 = scmp.ne.s32.totalorder %s54, %s57
      %p66 = scmp.eq.s32.totalorder %s23, 4
      %p67 = por %p65, %p66
      %p68 = scmp.ne.s32.totalorder %s57, %s58
      %p69 = scmp.eq.s32.totalorder %s23, 0
      %p70 = por %p68, %p69
      %p71 = scmp.ne.s32.totalorder %s57, %s58
      %p72 = scmp.eq.s32.totalorder %s24, 4
      %p73 = por %p71, %p72
      %p75 = scmp.ne.s32.totalorder %s58, %s74
      %p76 = scmp.eq.s32.totalorder %s24, 0
      %p77 = por %p75, %p76
      %s78 = ssub.s32 %s18, %s25
      %p79 = scmp.eq.s32.totalorder %s78, 0
      %s81 = sadd.s32 %s80, 1
      %s82 = scalar_select %p79, %s80, %s81
      %p85 = pneg %p79
      %p86 = scmp.eq.s32.totalorder %s18, 4
      %p87 = por %p85, %p86
      %p88 = scmp.ne.s32.totalorder %s80, %s83
      %p89 = scmp.eq.s32.totalorder %s18, 0
      %p90 = por %p88, %p89
      %p91 = scmp.ne.s32.totalorder %s80, %s83
      %p92 = scmp.eq.s32.totalorder %s23, 4
      %p93 = por %p91, %p92
      %p94 = scmp.ne.s32.totalorder %s83, %s84
      %p95 = scmp.eq.s32.totalorder %s23, 0
      %p96 = por %p94, %p95
      %p97 = scmp.ne.s32.totalorder %s83, %s84
      %p98 = scmp.eq.s32.totalorder %s24, 4
      %p99 = por %p97, %p98
      %p101 = scmp.ne.s32.totalorder %s84, %s100
      %p102 = scmp.eq.s32.totalorder %s24, 0
      %p103 = por %p101, %p102
      %s104 = ssub.s32 %s18, %s25
      %p105 = scmp.eq.s32.totalorder %s104, 0
      %s107 = sadd.s32 %s106, 1
      %s108 = scalar_select %p105, %s106, %s107
      %p111 = pneg %p105
      %p112 = scmp.eq.s32.totalorder %s18, 4
      %p113 = por %p111, %p112
      %p114 = scmp.ne.s32.totalorder %s106, %s109
      %p115 = scmp.eq.s32.totalorder %s18, 0
      %p116 = por %p114, %p115
      %p117 = scmp.ne.s32.totalorder %s106, %s109
      %p118 = scmp.eq.s32.totalorder %s23, 4
      %p119 = por %p117, %p118
      %p120 = scmp.ne.s32.totalorder %s109, %s110
      %p121 = scmp.eq.s32.totalorder %s23, 0
      %p122 = por %p120, %p121
      %p123 = scmp.ne.s32.totalorder %s109, %s110
      %p124 = scmp.eq.s32.totalorder %s24, 4
      %p125 = por %p123, %p124
      %p127 = scmp.ne.s32.totalorder %s110, %s126
      %p128 = scmp.eq.s32.totalorder %s24, 0
      %p129 = por %p127, %p128
      %p130 = scmp.le.s32.totalorder 1, %s18
      %p131 = scmp.lt.s32.totalorder %s18, 6
      %p132 = pnand %p130, %p131
      %p133 = pneg %p132
      // Predicated region
      $region9: #{tpu_custom_call.1} parent=5 // pred_check
        _
      $region10: #{tpu_custom_call.1} parent=5 // pred_check_branch
        %135 = sbr.rel (%p132) target = $region12
      $region11: #{tpu_custom_call.1} parent=5 // pred_region
        %s136 = ssub.s32 %s18, 1
      $region12: #{tpu_custom_call.1} parent=5 // pred_fallthru
        _
      %p137 = scmp.lt.s32.totalorder %s18, 5
      // Predicated region
      $region13: #{tpu_custom_call.1} parent=5 // pred_check
        %p138 = pneg %p137
      $region14: #{tpu_custom_call.1} parent=5 // pred_check_branch
        %140 = sbr.rel (%p138) target = $region16
      $region15: #{tpu_custom_call.1} parent=5 // pred_region
        // Predicated region
        $region17: #{tpu_custom_call.1} parent=15 // pred_check
          %p141 = pneg %p38
        $region18: #{tpu_custom_call.1} parent=15 // pred_check_branch
          %143 = sbr.rel (%p141) target = $region20
        $region19: #{tpu_custom_call.1} parent=15 // pred_region
          %s144 = sand.u32 %s28, 1
          %s145 = scalar_lea.sflag [#allocation3], %s144
          %s146 = sand.u32 %s28, 1
          %s147 = smul.addr %s146, 256
          %s148 = scalar_lea.vmem [#allocation2], %s147
          %s149 = smul.u32 16, %s18
          %s150 = ssub.s32 65, %s149
          %p151 = scmp.lt.s32.totalorder %s150, 16
          %s152 = scalar_select %p151, %s150, 16
          %s153 = smul.u32 128, %s152
          %s154 = smul.u32 %s153, 2
          %s156 = ssub.s32 4096, %s154
          %157 = vsyncadd %s145, %s156
          %p158 = scmp.ne.s32.totalorder 0, %s154
          %s159 = smul.addr %s149, 2
          %s160 = smul.addr %s159, 128
          %s161 = scalar_lea.hbm %s0, %s160
          %s162 = smul.u32 16, %s152
          %s163 = sshll.u32 %s148, 4
          %s164 = int_to_ptr.vmem [resolvable:$true] %s163
          %s165 = sshll.u32 %s162, 4
          %169 = dma.hbm_to_vmem [thread:$0]  (%p158), %s161, %s165, %s164, %s145, 256, 256, 16
        $region20: #{tpu_custom_call.1} parent=15 // pred_fallthru
          _
        // Predicated region
        $region21: #{tpu_custom_call.1} parent=15 // pred_check
          %p170 = pneg %p64
        $region22: #{tpu_custom_call.1} parent=15 // pred_check_branch
          %172 = sbr.rel (%p170) target = $region24
        $region23: #{tpu_custom_call.1} parent=15 // pred_region
          %s173 = sand.u32 %s18, 1
          %s174 = scalar_lea.sflag [#allocation6], %s173
          %s175 = sand.u32 %s54, 1
          %s176 = smul.addr %s175, 256
          %s177 = scalar_lea.vmem [#allocation5], %s176
          %s178 = smul.u32 16, %s18
          %s179 = ssub.s32 65, %s178
          %p180 = scmp.lt.s32.totalorder %s179, 16
          %s181 = scalar_select %p180, %s179, 16
          %s182 = smul.u32 128, %s181
          %s183 = smul.u32 %s182, 2
          %s185 = ssub.s32 4096, %s183
          %186 = vsyncadd %s174, %s185
          %p187 = scmp.ne.s32.totalorder 0, %s183
          %s188 = smul.addr %s178, 2
          %s189 = smul.addr %s188, 128
          %s190 = scalar_lea.hbm %s1, %s189
          %s191 = smul.u32 16, %s181
          %s192 = sshll.u32 %s177, 4
          %s193 = int_to_ptr.vmem [resolvable:$true] %s192
          %s194 = sshll.u32 %s191, 4
          %198 = dma.hbm_to_vmem [thread:$0]  (%p187), %s190, %s194, %s193, %s174, 256, 256, 16
        $region24: #{tpu_custom_call.1} parent=15 // pred_fallthru
          _
        // Predicated region
        $region25: #{tpu_custom_call.1} parent=15 // pred_check
          %p199 = pneg %p90
        $region26: #{tpu_custom_call.1} parent=15 // pred_check_branch
          %201 = sbr.rel (%p199) target = $region28
        $region27: #{tpu_custom_call.1} parent=15 // pred_region
          %s202 = sand.u32 %s18, 1
          %s203 = scalar_lea.sflag [#allocation6], %s202
          %s204 = sand.u32 %s80, 1
          %s205 = smul.addr %s204, 256
          %s206 = scalar_lea.vmem [#allocation7], %s205
          %s207 = smul.u32 16, %s18
          %s208 = ssub.s32 65, %s207
          %p209 = scmp.lt.s32.totalorder %s208, 16
          %s210 = scalar_select %p209, %s208, 16
          %s211 = smul.u32 128, %s210
          %s212 = smul.u32 %s211, 2
          %s214 = ssub.s32 4096, %s212
          %215 = vsyncadd %s203, %s214
          %p216 = scmp.ne.s32.totalorder 0, %s212
          %s217 = smul.addr %s207, 2
          %s218 = smul.addr %s217, 128
          %s219 = scalar_lea.hbm %s2, %s218
          %s220 = smul.u32 16, %s210
          %s221 = sshll.u32 %s206, 4
          %s222 = int_to_ptr.vmem [resolvable:$true] %s221
          %s223 = sshll.u32 %s220, 4
          %227 = dma.hbm_to_vmem [thread:$0]  (%p216), %s219, %s223, %s222, %s203, 256, 256, 16
        $region28: #{tpu_custom_call.1} parent=15 // pred_fallthru
          _
      $region16: #{tpu_custom_call.1} parent=5 // pred_fallthru
        _
      %p228 = scmp.le.s32.totalorder 1, %s18
      %p229 = scmp.lt.s32.totalorder %s18, 6
      %p230 = pnand %p228, %p229
      %p231 = pneg %p230
      // Predicated region
      $region29: #{tpu_custom_call.1} parent=5 // pred_check
        _
      $region30: #{tpu_custom_call.1} parent=5 // pred_check_branch
        %233 = sbr.rel (%p230) target = $region32
      $region31: #{tpu_custom_call.1} parent=5 // pred_region
        %s234 = ssub.s32 %s18, 1
        %s235 = sand.u32 %s31, 1
        %s236 = scalar_lea.sflag [#allocation3], %s235
        %s237 = sand.u32 %s31, 1
        %s238 = smul.addr %s237, 256
        %s239 = scalar_lea.vmem [#allocation2], %s238
        // Predicated region
        $region33: #{tpu_custom_call.1} parent=31 // pred_check
          %p240 = pneg %p44
        $region34: #{tpu_custom_call.1} parent=31 // pred_check_branch
          %242 = sbr.rel (%p240) target = $region36
        $region35: #{tpu_custom_call.1} parent=31 // pred_region
          %243 = dma.done %s236, 4096
        $region36: #{tpu_custom_call.1} parent=31 // pred_fallthru
          _
        %s244 = sand.u32 %s23, 1
        %s245 = scalar_lea.sflag [#allocation6], %s244
        %s246 = sand.u32 %s57, 1
        %s247 = smul.addr %s246, 256
        %s248 = scalar_lea.vmem [#allocation5], %s247
        // Predicated region
        $region37: #{tpu_custom_call.1} parent=31 // pred_check
          %p249 = pneg %p70
        $region38: #{tpu_custom_call.1} parent=31 // pred_check_branch
          %251 = sbr.rel (%p249) target = $region40
        $region39: #{tpu_custom_call.1} parent=31 // pred_region
          %252 = dma.done %s245, 4096
        $region40: #{tpu_custom_call.1} parent=31 // pred_fallthru
          _
        %s253 = sand.u32 %s23, 1
        %s254 = scalar_lea.sflag [#allocation6], %s253
        %s255 = sand.u32 %s83, 1
        %s256 = smul.addr %s255, 256
        %s257 = scalar_lea.vmem [#allocation7], %s256
        // Predicated region
        $region41: #{tpu_custom_call.1} parent=31 // pred_check
          %p258 = pneg %p96
        $region42: #{tpu_custom_call.1} parent=31 // pred_check_branch
          %260 = sbr.rel (%p258) target = $region44
        $region43: #{tpu_custom_call.1} parent=31 // pred_region
          %261 = dma.done %s254, 4096
        $region44: #{tpu_custom_call.1} parent=31 // pred_fallthru
          _
        %s262 = sand.u32 %s31, 1
        %s263 = scalar_lea.sflag [#allocation3], %s262
        %s264 = sand.u32 %s31, 1
        %s265 = smul.addr %s264, 256
        %s266 = scalar_lea.vmem [#allocation2], %s265
        %p267 = pneg %p44
        %p268 = pneg %p41
        %s269 = sand.u32 %s23, 1
        %s270 = scalar_lea.sflag [#allocation6], %s269
        %s271 = sand.u32 %s57, 1
        %s272 = smul.addr %s271, 256
        %s273 = scalar_lea.vmem [#allocation5], %s272
        %p274 = pneg %p70
        %p275 = pneg %p67
        %s276 = sand.u32 %s23, 1
        %s277 = scalar_lea.sflag [#allocation6], %s276
        %s278 = sand.u32 %s83, 1
        %s279 = smul.addr %s278, 256
        %s280 = scalar_lea.vmem [#allocation7], %s279
        %p281 = pneg %p96
        %p282 = pneg %p93
        %p283 = pneg %p122
        %p284 = pneg %p119
        %s285 = sand.u32 %s109, 1
        %s286 = scalar_lea.sflag [#allocation4], %s285
        %s287 = sand.u32 %s109, 1
        %s288 = smul.addr %s287, 8
        %s289 = scalar_lea.vmem [#allocation8], %s288
        %s290 = smul.u32 16, %s23
        %s291 = ssub.s32 65, %s290
        %p292 = scmp.lt.s32.totalorder %s291, 16
        %s293 = scalar_select %p292, %s291, 16
        %s294 = smul.u32 128, %s293
        %s295 = smul.u32 %s294, 2
        %s296 = smul.u32 16, %s23
        %s297 = ssub.s32 65, %s296
        %p298 = scmp.lt.s32.totalorder %s297, 16
        %s299 = scalar_select %p298, %s297, 16
        %s300 = smul.u32 128, %s299
        %s301 = smul.u32 %s300, 2
        %s302 = smul.u32 16, %s23
        %s303 = ssub.s32 65, %s302
        %p304 = scmp.lt.s32.totalorder %s303, 16
        %s305 = scalar_select %p304, %s303, 16
        %s306 = smul.u32 128, %s305
        %s307 = smul.u32 %s306, 2
        %v308 = vld [vmem:[%s239] sm:$0xff]
        %v309 = vld [vmem:[%s239 + $0x8] sm:$0xff]
        %v310 = vld [vmem:[%s239 + $0x10] sm:$0xff]
        %v311 = vld [vmem:[%s239 + $0x18] sm:$0xff]
        %v312 = vld [vmem:[%s239 + $0x20] sm:$0xff]
        %v313 = vld [vmem:[%s239 + $0x28] sm:$0xff]
        %v314 = vld [vmem:[%s239 + $0x30] sm:$0xff]
        %v315 = vld [vmem:[%s239 + $0x38] sm:$0xff]
        %v316 = vld [vmem:[%s239 + $0x40] sm:$0xff]
        %v317 = vld [vmem:[%s239 + $0x48] sm:$0xff]
        %v318 = vld [vmem:[%s239 + $0x50] sm:$0xff]
        %v319 = vld [vmem:[%s239 + $0x58] sm:$0xff]
        %v320 = vld [vmem:[%s239 + $0x60] sm:$0xff]
        %v321 = vld [vmem:[%s239 + $0x68] sm:$0xff]
        %v322 = vld [vmem:[%s239 + $0x70] sm:$0xff]
        %v323 = vld [vmem:[%s239 + $0x78] sm:$0xff]
        %v324 = vld [vmem:[%s239 + $0x80] sm:$0xff]
        %v325 = vld [vmem:[%s239 + $0x88] sm:$0xff]
        %v326 = vld [vmem:[%s239 + $0x90] sm:$0xff]
        %v327 = vld [vmem:[%s239 + $0x98] sm:$0xff]
        %v328 = vld [vmem:[%s239 + $0xa0] sm:$0xff]
        %v329 = vld [vmem:[%s239 + $0xa8] sm:$0xff]
        %v330 = vld [vmem:[%s239 + $0xb0] sm:$0xff]
        %v331 = vld [vmem:[%s239 + $0xb8] sm:$0xff]
        %v332 = vld [vmem:[%s239 + $0xc0] sm:$0xff]
        %v333 = vld [vmem:[%s239 + $0xc8] sm:$0xff]
        %v334 = vld [vmem:[%s239 + $0xd0] sm:$0xff]
        %v335 = vld [vmem:[%s239 + $0xd8] sm:$0xff]
        %v336 = vld [vmem:[%s239 + $0xe0] sm:$0xff]
        %v337 = vld [vmem:[%s239 + $0xe8] sm:$0xff]
        %v338 = vld [vmem:[%s239 + $0xf0] sm:$0xff]
        %v339 = vld [vmem:[%s239 + $0xf8] sm:$0xff]
        %v340 = vld [vmem:[%s248] sm:$0xff]
        %v341 = vld [vmem:[%s248 + $0x8] sm:$0xff]
        %v342 = vld [vmem:[%s248 + $0x10] sm:$0xff]
        %v343 = vld [vmem:[%s248 + $0x18] sm:$0xff]
        %v344 = vld [vmem:[%s248 + $0x20] sm:$0xff]
        %v345 = vld [vmem:[%s248 + $0x28] sm:$0xff]
        %v346 = vld [vmem:[%s248 + $0x30] sm:$0xff]
        %v347 = vld [vmem:[%s248 + $0x38] sm:$0xff]
        %v348 = vld [vmem:[%s248 + $0x40] sm:$0xff]
        %v349 = vld [vmem:[%s248 + $0x48] sm:$0xff]
        %v350 = vld [vmem:[%s248 + $0x50] sm:$0xff]
        %v351 = vld [vmem:[%s248 + $0x58] sm:$0xff]
        %v352 = vld [vmem:[%s248 + $0x60] sm:$0xff]
        %v353 = vld [vmem:[%s248 + $0x68] sm:$0xff]
        %v354 = vld [vmem:[%s248 + $0x70] sm:$0xff]
        %v355 = vld [vmem:[%s248 + $0x78] sm:$0xff]
        %v356 = vld [vmem:[%s248 + $0x80] sm:$0xff]
        %v357 = vld [vmem:[%s248 + $0x88] sm:$0xff]
        %v358 = vld [vmem:[%s248 + $0x90] sm:$0xff]
        %v359 = vld [vmem:[%s248 + $0x98] sm:$0xff]
        %v360 = vld [vmem:[%s248 + $0xa0] sm:$0xff]
        %v361 = vld [vmem:[%s248 + $0xa8] sm:$0xff]
        %v362 = vld [vmem:[%s248 + $0xb0] sm:$0xff]
        %v363 = vld [vmem:[%s248 + $0xb8] sm:$0xff]
        %v364 = vld [vmem:[%s248 + $0xc0] sm:$0xff]
        %v365 = vld [vmem:[%s248 + $0xc8] sm:$0xff]
        %v366 = vld [vmem:[%s248 + $0xd0] sm:$0xff]
        %v367 = vld [vmem:[%s248 + $0xd8] sm:$0xff]
        %v368 = vld [vmem:[%s248 + $0xe0] sm:$0xff]
        %v369 = vld [vmem:[%s248 + $0xe8] sm:$0xff]
        %v370 = vld [vmem:[%s248 + $0xf0] sm:$0xff]
        %v371 = vld [vmem:[%s248 + $0xf8] sm:$0xff]
        %v372 = vld [vmem:[%s257] sm:$0xff]
        %v373 = vld [vmem:[%s257 + $0x8] sm:$0xff]
        %v374 = vld [vmem:[%s257 + $0x10] sm:$0xff]
        %v375 = vld [vmem:[%s257 + $0x18] sm:$0xff]
        %v376 = vld [vmem:[%s257 + $0x20] sm:$0xff]
        %v377 = vld [vmem:[%s257 + $0x28] sm:$0xff]
        %v378 = vld [vmem:[%s257 + $0x30] sm:$0xff]
        %v379 = vld [vmem:[%s257 + $0x38] sm:$0xff]
        %v380 = vld [vmem:[%s257 + $0x40] sm:$0xff]
        %v381 = vld [vmem:[%s257 + $0x48] sm:$0xff]
        %v382 = vld [vmem:[%s257 + $0x50] sm:$0xff]
        %v383 = vld [vmem:[%s257 + $0x58] sm:$0xff]
        %v384 = vld [vmem:[%s257 + $0x60] sm:$0xff]
        %v385 = vld [vmem:[%s257 + $0x68] sm:$0xff]
        %v386 = vld [vmem:[%s257 + $0x70] sm:$0xff]
        %v387 = vld [vmem:[%s257 + $0x78] sm:$0xff]
        %v388 = vld [vmem:[%s257 + $0x80] sm:$0xff]
        %v389 = vld [vmem:[%s257 + $0x88] sm:$0xff]
        %v390 = vld [vmem:[%s257 + $0x90] sm:$0xff]
        %v391 = vld [vmem:[%s257 + $0x98] sm:$0xff]
        %v392 = vld [vmem:[%s257 + $0xa0] sm:$0xff]
        %v393 = vld [vmem:[%s257 + $0xa8] sm:$0xff]
        %v394 = vld [vmem:[%s257 + $0xb0] sm:$0xff]
        %v395 = vld [vmem:[%s257 + $0xb8] sm:$0xff]
        %v396 = vld [vmem:[%s257 + $0xc0] sm:$0xff]
        %v397 = vld [vmem:[%s257 + $0xc8] sm:$0xff]
        %v398 = vld [vmem:[%s257 + $0xd0] sm:$0xff]
        %v399 = vld [vmem:[%s257 + $0xd8] sm:$0xff]
        %v400 = vld [vmem:[%s257 + $0xe0] sm:$0xff]
        %v401 = vld [vmem:[%s257 + $0xe8] sm:$0xff]
        %v402 = vld [vmem:[%s257 + $0xf0] sm:$0xff]
        %v403 = vld [vmem:[%s257 + $0xf8] sm:$0xff]
        %v404 = vsub.f32 %v308, %v340
        %v405 = vsub.f32 %v309, %v341
        %v406 = vsub.f32 %v310, %v342
        %v407 = vsub.f32 %v311, %v343
        %v408 = vsub.f32 %v312, %v344
        %v409 = vsub.f32 %v313, %v345
        %v410 = vsub.f32 %v314, %v346
        %v411 = vsub.f32 %v315, %v347
        %v412 = vsub.f32 %v316, %v348
        %v413 = vsub.f32 %v317, %v349
        %v414 = vsub.f32 %v318, %v350
        %v415 = vsub.f32 %v319, %v351
        %v416 = vsub.f32 %v320, %v352
        %v417 = vsub.f32 %v321, %v353
        %v418 = vsub.f32 %v322, %v354
        %v419 = vsub.f32 %v323, %v355
        %v420 = vsub.f32 %v324, %v356
        %v421 = vsub.f32 %v325, %v357
        %v422 = vsub.f32 %v326, %v358
        %v423 = vsub.f32 %v327, %v359
        %v424 = vsub.f32 %v328, %v360
        %v425 = vsub.f32 %v329, %v361
        %v426 = vsub.f32 %v330, %v362
        %v427 = vsub.f32 %v331, %v363
        %v428 = vsub.f32 %v332, %v364
        %v429 = vsub.f32 %v333, %v365
        %v430 = vsub.f32 %v334, %v366
        %v431 = vsub.f32 %v335, %v367
        %v432 = vsub.f32 %v336, %v368
        %v433 = vsub.f32 %v337, %v369
        %v434 = vsub.f32 %v338, %v370
        %v435 = vsub.f32 %v339, %v371
        %v436 = vadd.f32 %v404, 1e-06
        %v437 = vadd.f32 %v405, 1e-06
        %v438 = vadd.f32 %v406, 1e-06
        %v439 = vadd.f32 %v407, 1e-06
        %v440 = vadd.f32 %v408, 1e-06
        %v441 = vadd.f32 %v409, 1e-06
        %v442 = vadd.f32 %v410, 1e-06
        %v443 = vadd.f32 %v411, 1e-06
        %v444 = vadd.f32 %v412, 1e-06
        %v445 = vadd.f32 %v413, 1e-06
        %v446 = vadd.f32 %v414, 1e-06
        %v447 = vadd.f32 %v415, 1e-06
        %v448 = vadd.f32 %v416, 1e-06
        %v449 = vadd.f32 %v417, 1e-06
        %v450 = vadd.f32 %v418, 1e-06
        %v451 = vadd.f32 %v419, 1e-06
        %v452 = vadd.f32 %v420, 1e-06
        %v453 = vadd.f32 %v421, 1e-06
        %v454 = vadd.f32 %v422, 1e-06
        %v455 = vadd.f32 %v423, 1e-06
        %v456 = vadd.f32 %v424, 1e-06
        %v457 = vadd.f32 %v425, 1e-06
        %v458 = vadd.f32 %v426, 1e-06
        %v459 = vadd.f32 %v427, 1e-06
        %v460 = vadd.f32 %v428, 1e-06
        %v461 = vadd.f32 %v429, 1e-06
        %v462 = vadd.f32 %v430, 1e-06
        %v463 = vadd.f32 %v431, 1e-06
        %v464 = vadd.f32 %v432, 1e-06
        %v465 = vadd.f32 %v433, 1e-06
        %v466 = vadd.f32 %v434, 1e-06
        %v467 = vadd.f32 %v435, 1e-06
        %v468 = vsub.f32 %v308, %v372
        %v469 = vsub.f32 %v309, %v373
        %v470 = vsub.f32 %v310, %v374
        %v471 = vsub.f32 %v311, %v375
        %v472 = vsub.f32 %v312, %v376
        %v473 = vsub.f32 %v313, %v377
        %v474 = vsub.f32 %v314, %v378
        %v475 = vsub.f32 %v315, %v379
        %v476 = vsub.f32 %v316, %v380
        %v477 = vsub.f32 %v317, %v381
        %v478 = vsub.f32 %v318, %v382
        %v479 = vsub.f32 %v319, %v383
        %v480 = vsub.f32 %v320, %v384
        %v481 = vsub.f32 %v321, %v385
        %v482 = vsub.f32 %v322, %v386
        %v483 = vsub.f32 %v323, %v387
        %v484 = vsub.f32 %v324, %v388
        %v485 = vsub.f32 %v325, %v389
        %v486 = vsub.f32 %v326, %v390
        %v487 = vsub.f32 %v327, %v391
        %v488 = vsub.f32 %v328, %v392
        %v489 = vsub.f32 %v329, %v393
        %v490 = vsub.f32 %v330, %v394
        %v491 = vsub.f32 %v331, %v395
        %v492 = vsub.f32 %v332, %v396
        %v493 = vsub.f32 %v333, %v397
        %v494 = vsub.f32 %v334, %v398
        %v495 = vsub.f32 %v335, %v399
        %v496 = vsub.f32 %v336, %v400
        %v497 = vsub.f32 %v337, %v401
        %v498 = vsub.f32 %v338, %v402
        %v499 = vsub.f32 %v339, %v403
        %v500 = vadd.f32 %v468, 1e-06
        %v501 = vadd.f32 %v469, 1e-06
        %v502 = vadd.f32 %v470, 1e-06
        %v503 = vadd.f32 %v471, 1e-06
        %v504 = vadd.f32 %v472, 1e-06
        %v505 = vadd.f32 %v473, 1e-06
        %v506 = vadd.f32 %v474, 1e-06
        %v507 = vadd.f32 %v475, 1e-06
        %v508 = vadd.f32 %v476, 1e-06
        %v509 = vadd.f32 %v477, 1e-06
        %v510 = vadd.f32 %v478, 1e-06
        %v511 = vadd.f32 %v479, 1e-06
        %v512 = vadd.f32 %v480, 1e-06
        %v513 = vadd.f32 %v481, 1e-06
        %v514 = vadd.f32 %v482, 1e-06
        %v515 = vadd.f32 %v483, 1e-06
        %v516 = vadd.f32 %v484, 1e-06
        %v517 = vadd.f32 %v485, 1e-06
        %v518 = vadd.f32 %v486, 1e-06
        %v519 = vadd.f32 %v487, 1e-06
        %v520 = vadd.f32 %v488, 1e-06
        %v521 = vadd.f32 %v489, 1e-06
        %v522 = vadd.f32 %v490, 1e-06
        %v523 = vadd.f32 %v491, 1e-06
        %v524 = vadd.f32 %v492, 1e-06
        %v525 = vadd.f32 %v493, 1e-06
        %v526 = vadd.f32 %v494, 1e-06
        %v527 = vadd.f32 %v495, 1e-06
        %v528 = vadd.f32 %v496, 1e-06
        %v529 = vadd.f32 %v497, 1e-06
        %v530 = vadd.f32 %v498, 1e-06
        %v531 = vadd.f32 %v499, 1e-06
        %v532 = vmul.f32 %v436, %v436
        %v533 = vmul.f32 %v437, %v437
        %v534 = vmul.f32 %v438, %v438
        %v535 = vmul.f32 %v439, %v439
        %v536 = vmul.f32 %v440, %v440
        %v537 = vmul.f32 %v441, %v441
        %v538 = vmul.f32 %v442, %v442
        %v539 = vmul.f32 %v443, %v443
        %v540 = vmul.f32 %v444, %v444
        %v541 = vmul.f32 %v445, %v445
        %v542 = vmul.f32 %v446, %v446
        %v543 = vmul.f32 %v447, %v447
        %v544 = vmul.f32 %v448, %v448
        %v545 = vmul.f32 %v449, %v449
        %v546 = vmul.f32 %v450, %v450
        %v547 = vmul.f32 %v451, %v451
        %v548 = vmul.f32 %v452, %v452
        %v549 = vmul.f32 %v453, %v453
        %v550 = vmul.f32 %v454, %v454
        %v551 = vmul.f32 %v455, %v455
        %v552 = vmul.f32 %v456, %v456
        %v553 = vmul.f32 %v457, %v457
        %v554 = vmul.f32 %v458, %v458
        %v555 = vmul.f32 %v459, %v459
        %v556 = vmul.f32 %v460, %v460
        %v557 = vmul.f32 %v461, %v461
        %v558 = vmul.f32 %v462, %v462
        %v559 = vmul.f32 %v463, %v463
        %v560 = vmul.f32 %v464, %v464
        %v561 = vmul.f32 %v465, %v465
        %v562 = vmul.f32 %v466, %v466
        %v563 = vmul.f32 %v467, %v467
        %v564 = vadd.f32 %v532, %v533
        %565 = vadd.xlane.f32.xlu0 %v564
        %v566 = vpop.xlane.xlu0 %565
        %v567 = vadd.f32 %v534, %v535
        %568 = vadd.xlane.f32.xlu0 %v567
        %v569 = vpop.xlane.xlu0 %568
        %v570 = vadd.f32 %v536, %v537
        %571 = vadd.xlane.f32.xlu0 %v570
        %v572 = vpop.xlane.xlu0 %571
        %v573 = vadd.f32 %v538, %v539
        %574 = vadd.xlane.f32.xlu0 %v573
        %v575 = vpop.xlane.xlu0 %574
        %v576 = vadd.f32 %v540, %v541
        %577 = vadd.xlane.f32.xlu0 %v576
        %v578 = vpop.xlane.xlu0 %577
        %v579 = vadd.f32 %v542, %v543
        %580 = vadd.xlane.f32.xlu0 %v579
        %v581 = vpop.xlane.xlu0 %580
        %v582 = vadd.f32 %v544, %v545
        %583 = vadd.xlane.f32.xlu0 %v582
        %v584 = vpop.xlane.xlu0 %583
        %v585 = vadd.f32 %v546, %v547
        %586 = vadd.xlane.f32.xlu0 %v585
        %v587 = vpop.xlane.xlu0 %586
        %v588 = vadd.f32 %v548, %v549
        %589 = vadd.xlane.f32.xlu0 %v588
        %v590 = vpop.xlane.xlu0 %589
        %v591 = vadd.f32 %v550, %v551
        %592 = vadd.xlane.f32.xlu0 %v591
        %v593 = vpop.xlane.xlu0 %592
        %v594 = vadd.f32 %v552, %v553
        %595 = vadd.xlane.f32.xlu0 %v594
        %v596 = vpop.xlane.xlu0 %595
        %v597 = vadd.f32 %v554, %v555
        %598 = vadd.xlane.f32.xlu0 %v597
        %v599 = vpop.xlane.xlu0 %598
        %v600 = vadd.f32 %v556, %v557
        %601 = vadd.xlane.f32.xlu0 %v600
        %v602 = vpop.xlane.xlu0 %601
        %v603 = vadd.f32 %v558, %v559
        %604 = vadd.xlane.f32.xlu0 %v603
        %v605 = vpop.xlane.xlu0 %604
        %v606 = vadd.f32 %v560, %v561
        %607 = vadd.xlane.f32.xlu0 %v606
        %v608 = vpop.xlane.xlu0 %607
        %v609 = vadd.f32 %v562, %v563
        %610 = vadd.xlane.f32.xlu0 %v609
        %v611 = vpop.xlane.xlu0 %610
        %v612 = vmul.f32 %v500, %v500
        %v613 = vmul.f32 %v501, %v501
        %v614 = vmul.f32 %v502, %v502
        %v615 = vmul.f32 %v503, %v503
        %v616 = vmul.f32 %v504, %v504
        %v617 = vmul.f32 %v505, %v505
        %v618 = vmul.f32 %v506, %v506
        %v619 = vmul.f32 %v507, %v507
        %v620 = vmul.f32 %v508, %v508
        %v621 = vmul.f32 %v509, %v509
        %v622 = vmul.f32 %v510, %v510
        %v623 = vmul.f32 %v511, %v511
        %v624 = vmul.f32 %v512, %v512
        %v625 = vmul.f32 %v513, %v513
        %v626 = vmul.f32 %v514, %v514
        %v627 = vmul.f32 %v515, %v515
        %v628 = vmul.f32 %v516, %v516
        %v629 = vmul.f32 %v517, %v517
        %v630 = vmul.f32 %v518, %v518
        %v631 = vmul.f32 %v519, %v519
        %v632 = vmul.f32 %v520, %v520
        %v633 = vmul.f32 %v521, %v521
        %v634 = vmul.f32 %v522, %v522
        %v635 = vmul.f32 %v523, %v523
        %v636 = vmul.f32 %v524, %v524
        %v637 = vmul.f32 %v525, %v525
        %v638 = vmul.f32 %v526, %v526
        %v639 = vmul.f32 %v527, %v527
        %v640 = vmul.f32 %v528, %v528
        %v641 = vmul.f32 %v529, %v529
        %v642 = vmul.f32 %v530, %v530
        %v643 = vmul.f32 %v531, %v531
        %v644 = vadd.f32 %v612, %v613
        %645 = vadd.xlane.f32.xlu0 %v644
        %v646 = vpop.xlane.xlu0 %645
        %v647 = vadd.f32 %v614, %v615
        %648 = vadd.xlane.f32.xlu0 %v647
        %v649 = vpop.xlane.xlu0 %648
        %v650 = vadd.f32 %v616, %v617
        %651 = vadd.xlane.f32.xlu0 %v650
        %v652 = vpop.xlane.xlu0 %651
        %v653 = vadd.f32 %v618, %v619
        %654 = vadd.xlane.f32.xlu0 %v653
        %v655 = vpop.xlane.xlu0 %654
        %v656 = vadd.f32 %v620, %v621
        %657 = vadd.xlane.f32.xlu0 %v656
        %v658 = vpop.xlane.xlu0 %657
        %v659 = vadd.f32 %v622, %v623
        %660 = vadd.xlane.f32.xlu0 %v659
        %v661 = vpop.xlane.xlu0 %660
        %v662 = vadd.f32 %v624, %v625
        %663 = vadd.xlane.f32.xlu0 %v662
        %v664 = vpop.xlane.xlu0 %663
        %v665 = vadd.f32 %v626, %v627
        %666 = vadd.xlane.f32.xlu0 %v665
        %v667 = vpop.xlane.xlu0 %666
        %v668 = vadd.f32 %v628, %v629
        %669 = vadd.xlane.f32.xlu0 %v668
        %v670 = vpop.xlane.xlu0 %669
        %v671 = vadd.f32 %v630, %v631
        %672 = vadd.xlane.f32.xlu0 %v671
        %v673 = vpop.xlane.xlu0 %672
        %v674 = vadd.f32 %v632, %v633
        %675 = vadd.xlane.f32.xlu0 %v674
        %v676 = vpop.xlane.xlu0 %675
        %v677 = vadd.f32 %v634, %v635
        %678 = vadd.xlane.f32.xlu0 %v677
        %v679 = vpop.xlane.xlu0 %678
        %v680 = vadd.f32 %v636, %v637
        %681 = vadd.xlane.f32.xlu0 %v680
        %v682 = vpop.xlane.xlu0 %681
        %v683 = vadd.f32 %v638, %v639
        %684 = vadd.xlane.f32.xlu0 %v683
        %v685 = vpop.xlane.xlu0 %684
        %v686 = vadd.f32 %v640, %v641
        %687 = vadd.xlane.f32.xlu0 %v686
        %v688 = vpop.xlane.xlu0 %687
        %v689 = vadd.f32 %v642, %v643
        %690 = vadd.xlane.f32.xlu0 %v689
        %v691 = vpop.xlane.xlu0 %690
        %s692 = smul.u32 %s23, 128
        %v693 = vlaneseq
        %v694 = vshrl.u32 %v693, 7
        %v695 = vadd.s32 %v694, 8
        %v696 = vadd.s32 %v694, 16
        %v697 = vadd.s32 %v694, 24
        %v698 = vadd.s32 %v694, 32
        %v699 = vadd.s32 %v694, 40
        %v700 = vadd.s32 %v694, 48
        %v701 = vadd.s32 %v694, 56
        %v702 = vadd.s32 %v694, 64
        %v703 = vadd.s32 %v694, 72
        %v704 = vadd.s32 %v694, 80
        %v705 = vadd.s32 %v694, 88
        %v706 = vadd.s32 %v694, 96
        %v707 = vadd.s32 %v694, 104
        %v708 = vadd.s32 %v694, 112
        %v709 = vadd.s32 %v694, 120
        %v710 = vstv %s692
        %v711 = vadd.s32 %v710, %v694
        %v712 = vadd.s32 %v710, %v695
        %v713 = vadd.s32 %v710, %v696
        %v714 = vadd.s32 %v710, %v697
        %v715 = vadd.s32 %v710, %v698
        %v716 = vadd.s32 %v710, %v699
        %v717 = vadd.s32 %v710, %v700
        %v718 = vadd.s32 %v710, %v701
        %v719 = vadd.s32 %v710, %v702
        %v720 = vadd.s32 %v710, %v703
        %v721 = vadd.s32 %v710, %v704
        %v722 = vadd.s32 %v710, %v705
        %v723 = vadd.s32 %v710, %v706
        %v724 = vadd.s32 %v710, %v707
        %v725 = vadd.s32 %v710, %v708
        %v726 = vadd.s32 %v710, %v709
        %vm727 = vcmp.lt.s32.totalorder %v711, 520
        %vm728 = vcmp.lt.s32.totalorder %v712, 520
        %vm729 = vcmp.lt.s32.totalorder %v713, 520
        %vm730 = vcmp.lt.s32.totalorder %v714, 520
        %vm731 = vcmp.lt.s32.totalorder %v715, 520
        %vm732 = vcmp.lt.s32.totalorder %v716, 520
        %vm733 = vcmp.lt.s32.totalorder %v717, 520
        %vm734 = vcmp.lt.s32.totalorder %v718, 520
        %vm735 = vcmp.lt.s32.totalorder %v719, 520
        %vm736 = vcmp.lt.s32.totalorder %v720, 520
        %vm737 = vcmp.lt.s32.totalorder %v721, 520
        %vm738 = vcmp.lt.s32.totalorder %v722, 520
        %vm739 = vcmp.lt.s32.totalorder %v723, 520
        %vm740 = vcmp.lt.s32.totalorder %v724, 520
        %vm741 = vcmp.lt.s32.totalorder %v725, 520
        %vm742 = vcmp.lt.s32.totalorder %v726, 520
        %v743 = vsel %vm727, %v566, 0.0
        %v744 = vsel %vm728, %v569, 0.0
        %v745 = vsel %vm729, %v572, 0.0
        %v746 = vsel %vm730, %v575, 0.0
        %v747 = vsel %vm731, %v578, 0.0
        %v748 = vsel %vm732, %v581, 0.0
        %v749 = vsel %vm733, %v584, 0.0
        %v750 = vsel %vm734, %v587, 0.0
        %v751 = vsel %vm735, %v590, 0.0
        %v752 = vsel %vm736, %v593, 0.0
        %v753 = vsel %vm737, %v596, 0.0
        %v754 = vsel %vm738, %v599, 0.0
        %v755 = vsel %vm739, %v602, 0.0
        %v756 = vsel %vm740, %v605, 0.0
        %v757 = vsel %vm741, %v608, 0.0
        %v758 = vsel %vm742, %v611, 0.0
        %v759 = vsel %vm727, %v646, 0.0
        %v760 = vsel %vm728, %v649, 0.0
        %v761 = vsel %vm729, %v652, 0.0
        %v762 = vsel %vm730, %v655, 0.0
        %v763 = vsel %vm731, %v658, 0.0
        %v764 = vsel %vm732, %v661, 0.0
        %v765 = vsel %vm733, %v664, 0.0
        %v766 = vsel %vm734, %v667, 0.0
        %v767 = vsel %vm735, %v670, 0.0
        %v768 = vsel %vm736, %v673, 0.0
        %v769 = vsel %vm737, %v676, 0.0
        %v770 = vsel %vm738, %v679, 0.0
        %v771 = vsel %vm739, %v682, 0.0
        %v772 = vsel %vm740, %v685, 0.0
        %v773 = vsel %vm741, %v688, 0.0
        %v774 = vsel %vm742, %v691, 0.0
        %v775 = vrsqrt.pop %v743
        %v776 = vmul.f32 %v743, %v775
        %vm777 = vcmp.eq.f32.partialorder %v743, inf
        %v778 = vsel %vm777, %v743, %v776
        %vm779 = vcmp.eq.f32.partialorder %v743, 0.0
        %v780 = vand.u32 %v743, 2147483648
        %v781 = vsel %vm779, %v780, %v778
        %v782 = vrsqrt.pop %v744
        %v783 = vmul.f32 %v744, %v782
        %vm784 = vcmp.eq.f32.partialorder %v744, inf
        %v785 = vsel %vm784, %v744, %v783
        %vm786 = vcmp.eq.f32.partialorder %v744, 0.0
        %v787 = vand.u32 %v744, 2147483648
        %v788 = vsel %vm786, %v787, %v785
        %v789 = vrsqrt.pop %v745
        %v790 = vmul.f32 %v745, %v789
        %vm791 = vcmp.eq.f32.partialorder %v745, inf
        %v792 = vsel %vm791, %v745, %v790
        %vm793 = vcmp.eq.f32.partialorder %v745, 0.0
        %v794 = vand.u32 %v745, 2147483648
        %v795 = vsel %vm793, %v794, %v792
        %v796 = vrsqrt.pop %v746
        %v797 = vmul.f32 %v746, %v796
        %vm798 = vcmp.eq.f32.partialorder %v746, inf
        %v799 = vsel %vm798, %v746, %v797
        %vm800 = vcmp.eq.f32.partialorder %v746, 0.0
        %v801 = vand.u32 %v746, 2147483648
        %v802 = vsel %vm800, %v801, %v799
        %v803 = vrsqrt.pop %v747
        %v804 = vmul.f32 %v747, %v803
        %vm805 = vcmp.eq.f32.partialorder %v747, inf
        %v806 = vsel %vm805, %v747, %v804
        %vm807 = vcmp.eq.f32.partialorder %v747, 0.0
        %v808 = vand.u32 %v747, 2147483648
        %v809 = vsel %vm807, %v808, %v806
        %v810 = vrsqrt.pop %v748
        %v811 = vmul.f32 %v748, %v810
        %vm812 = vcmp.eq.f32.partialorder %v748, inf
        %v813 = vsel %vm812, %v748, %v811
        %vm814 = vcmp.eq.f32.partialorder %v748, 0.0
        %v815 = vand.u32 %v748, 2147483648
        %v816 = vsel %vm814, %v815, %v813
        %v817 = vrsqrt.pop %v749
        %v818 = vmul.f32 %v749, %v817
        %vm819 = vcmp.eq.f32.partialorder %v749, inf
        %v820 = vsel %vm819, %v749, %v818
        %vm821 = vcmp.eq.f32.partialorder %v749, 0.0
        %v822 = vand.u32 %v749, 2147483648
        %v823 = vsel %vm821, %v822, %v820
        %v824 = vrsqrt.pop %v750
        %v825 = vmul.f32 %v750, %v824
        %vm826 = vcmp.eq.f32.partialorder %v750, inf
        %v827 = vsel %vm826, %v750, %v825
        %vm828 = vcmp.eq.f32.partialorder %v750, 0.0
        %v829 = vand.u32 %v750, 2147483648
        %v830 = vsel %vm828, %v829, %v827
        %v831 = vrsqrt.pop %v751
        %v832 = vmul.f32 %v751, %v831
        %vm833 = vcmp.eq.f32.partialorder %v751, inf
        %v834 = vsel %vm833, %v751, %v832
        %vm835 = vcmp.eq.f32.partialorder %v751, 0.0
        %v836 = vand.u32 %v751, 2147483648
        %v837 = vsel %vm835, %v836, %v834
        %v838 = vrsqrt.pop %v752
        %v839 = vmul.f32 %v752, %v838
        %vm840 = vcmp.eq.f32.partialorder %v752, inf
        %v841 = vsel %vm840, %v752, %v839
        %vm842 = vcmp.eq.f32.partialorder %v752, 0.0
        %v843 = vand.u32 %v752, 2147483648
        %v844 = vsel %vm842, %v843, %v841
        %v845 = vrsqrt.pop %v753
        %v846 = vmul.f32 %v753, %v845
        %vm847 = vcmp.eq.f32.partialorder %v753, inf
        %v848 = vsel %vm847, %v753, %v846
        %vm849 = vcmp.eq.f32.partialorder %v753, 0.0
        %v850 = vand.u32 %v753, 2147483648
        %v851 = vsel %vm849, %v850, %v848
        %v852 = vrsqrt.pop %v754
        %v853 = vmul.f32 %v754, %v852
        %vm854 = vcmp.eq.f32.partialorder %v754, inf
        %v855 = vsel %vm854, %v754, %v853
        %vm856 = vcmp.eq.f32.partialorder %v754, 0.0
        %v857 = vand.u32 %v754, 2147483648
        %v858 = vsel %vm856, %v857, %v855
        %v859 = vrsqrt.pop %v755
        %v860 = vmul.f32 %v755, %v859
        %vm861 = vcmp.eq.f32.partialorder %v755, inf
        %v862 = vsel %vm861, %v755, %v860
        %vm863 = vcmp.eq.f32.partialorder %v755, 0.0
        %v864 = vand.u32 %v755, 2147483648
        %v865 = vsel %vm863, %v864, %v862
        %v866 = vrsqrt.pop %v756
        %v867 = vmul.f32 %v756, %v866
        %vm868 = vcmp.eq.f32.partialorder %v756, inf
        %v869 = vsel %vm868, %v756, %v867
        %vm870 = vcmp.eq.f32.partialorder %v756, 0.0
        %v871 = vand.u32 %v756, 2147483648
        %v872 = vsel %vm870, %v871, %v869
        %v873 = vrsqrt.pop %v757
        %v874 = vmul.f32 %v757, %v873
        %vm875 = vcmp.eq.f32.partialorder %v757, inf
        %v876 = vsel %vm875, %v757, %v874
        %vm877 = vcmp.eq.f32.partialorder %v757, 0.0
        %v878 = vand.u32 %v757, 2147483648
        %v879 = vsel %vm877, %v878, %v876
        %v880 = vrsqrt.pop %v758
        %v881 = vmul.f32 %v758, %v880
        %vm882 = vcmp.eq.f32.partialorder %v758, inf
        %v883 = vsel %vm882, %v758, %v881
        %vm884 = vcmp.eq.f32.partialorder %v758, 0.0
        %v885 = vand.u32 %v758, 2147483648
        %v886 = vsel %vm884, %v885, %v883
        %v887 = vrsqrt.pop %v759
        %v888 = vmul.f32 %v759, %v887
        %vm889 = vcmp.eq.f32.partialorder %v759, inf
        %v890 = vsel %vm889, %v759, %v888
        %vm891 = vcmp.eq.f32.partialorder %v759, 0.0
        %v892 = vand.u32 %v759, 2147483648
        %v893 = vsel %vm891, %v892, %v890
        %v894 = vrsqrt.pop %v760
        %v895 = vmul.f32 %v760, %v894
        %vm896 = vcmp.eq.f32.partialorder %v760, inf
        %v897 = vsel %vm896, %v760, %v895
        %vm898 = vcmp.eq.f32.partialorder %v760, 0.0
        %v899 = vand.u32 %v760, 2147483648
        %v900 = vsel %vm898, %v899, %v897
        %v901 = vrsqrt.pop %v761
        %v902 = vmul.f32 %v761, %v901
        %vm903 = vcmp.eq.f32.partialorder %v761, inf
        %v904 = vsel %vm903, %v761, %v902
        %vm905 = vcmp.eq.f32.partialorder %v761, 0.0
        %v906 = vand.u32 %v761, 2147483648
        %v907 = vsel %vm905, %v906, %v904
        %v908 = vrsqrt.pop %v762
        %v909 = vmul.f32 %v762, %v908
        %vm910 = vcmp.eq.f32.partialorder %v762, inf
        %v911 = vsel %vm910, %v762, %v909
        %vm912 = vcmp.eq.f32.partialorder %v762, 0.0
        %v913 = vand.u32 %v762, 2147483648
        %v914 = vsel %vm912, %v913, %v911
        %v915 = vrsqrt.pop %v763
        %v916 = vmul.f32 %v763, %v915
        %vm917 = vcmp.eq.f32.partialorder %v763, inf
        %v918 = vsel %vm917, %v763, %v916
        %vm919 = vcmp.eq.f32.partialorder %v763, 0.0
        %v920 = vand.u32 %v763, 2147483648
        %v921 = vsel %vm919, %v920, %v918
        %v922 = vrsqrt.pop %v764
        %v923 = vmul.f32 %v764, %v922
        %vm924 = vcmp.eq.f32.partialorder %v764, inf
        %v925 = vsel %vm924, %v764, %v923
        %vm926 = vcmp.eq.f32.partialorder %v764, 0.0
        %v927 = vand.u32 %v764, 2147483648
        %v928 = vsel %vm926, %v927, %v925
        %v929 = vrsqrt.pop %v765
        %v930 = vmul.f32 %v765, %v929
        %vm931 = vcmp.eq.f32.partialorder %v765, inf
        %v932 = vsel %vm931, %v765, %v930
        %vm933 = vcmp.eq.f32.partialorder %v765, 0.0
        %v934 = vand.u32 %v765, 2147483648
        %v935 = vsel %vm933, %v934, %v932
        %v936 = vrsqrt.pop %v766
        %v937 = vmul.f32 %v766, %v936
        %vm938 = vcmp.eq.f32.partialorder %v766, inf
        %v939 = vsel %vm938, %v766, %v937
        %vm940 = vcmp.eq.f32.partialorder %v766, 0.0
        %v941 = vand.u32 %v766, 2147483648
        %v942 = vsel %vm940, %v941, %v939
        %v943 = vrsqrt.pop %v767
        %v944 = vmul.f32 %v767, %v943
        %vm945 = vcmp.eq.f32.partialorder %v767, inf
        %v946 = vsel %vm945, %v767, %v944
        %vm947 = vcmp.eq.f32.partialorder %v767, 0.0
        %v948 = vand.u32 %v767, 2147483648
        %v949 = vsel %vm947, %v948, %v946
        %v950 = vrsqrt.pop %v768
        %v951 = vmul.f32 %v768, %v950
        %vm952 = vcmp.eq.f32.partialorder %v768, inf
        %v953 = vsel %vm952, %v768, %v951
        %vm954 = vcmp.eq.f32.partialorder %v768, 0.0
        %v955 = vand.u32 %v768, 2147483648
        %v956 = vsel %vm954, %v955, %v953
        %v957 = vrsqrt.pop %v769
        %v958 = vmul.f32 %v769, %v957
        %vm959 = vcmp.eq.f32.partialorder %v769, inf
        %v960 = vsel %vm959, %v769, %v958
        %vm961 = vcmp.eq.f32.partialorder %v769, 0.0
        %v962 = vand.u32 %v769, 2147483648
        %v963 = vsel %vm961, %v962, %v960
        %v964 = vrsqrt.pop %v770
        %v965 = vmul.f32 %v770, %v964
        %vm966 = vcmp.eq.f32.partialorder %v770, inf
        %v967 = vsel %vm966, %v770, %v965
        %vm968 = vcmp.eq.f32.partialorder %v770, 0.0
        %v969 = vand.u32 %v770, 2147483648
        %v970 = vsel %vm968, %v969, %v967
        %v971 = vrsqrt.pop %v771
        %v972 = vmul.f32 %v771, %v971
        %vm973 = vcmp.eq.f32.partialorder %v771, inf
        %v974 = vsel %vm973, %v771, %v972
        %vm975 = vcmp.eq.f32.partialorder %v771, 0.0
        %v976 = vand.u32 %v771, 2147483648
        %v977 = vsel %vm975, %v976, %v974
        %v978 = vrsqrt.pop %v772
        %v979 = vmul.f32 %v772, %v978
        %vm980 = vcmp.eq.f32.partialorder %v772, inf
        %v981 = vsel %vm980, %v772, %v979
        %vm982 = vcmp.eq.f32.partialorder %v772, 0.0
        %v983 = vand.u32 %v772, 2147483648
        %v984 = vsel %vm982, %v983, %v981
        %v985 = vrsqrt.pop %v773
        %v986 = vmul.f32 %v773, %v985
        %vm987 = vcmp.eq.f32.partialorder %v773, inf
        %v988 = vsel %vm987, %v773, %v986
        %vm989 = vcmp.eq.f32.partialorder %v773, 0.0
        %v990 = vand.u32 %v773, 2147483648
        %v991 = vsel %vm989, %v990, %v988
        %v992 = vrsqrt.pop %v774
        %v993 = vmul.f32 %v774, %v992
        %vm994 = vcmp.eq.f32.partialorder %v774, inf
        %v995 = vsel %vm994, %v774, %v993
        %vm996 = vcmp.eq.f32.partialorder %v774, 0.0
        %v997 = vand.u32 %v774, 2147483648
        %v998 = vsel %vm996, %v997, %v995
        %v999 = vsub.f32 %v781, %v893
        %v1000 = vsub.f32 %v788, %v900
        %v1001 = vsub.f32 %v795, %v907
        %v1002 = vsub.f32 %v802, %v914
        %v1003 = vsub.f32 %v809, %v921
        %v1004 = vsub.f32 %v816, %v928
        %v1005 = vsub.f32 %v823, %v935
        %v1006 = vsub.f32 %v830, %v942
        %v1007 = vsub.f32 %v837, %v949
        %v1008 = vsub.f32 %v844, %v956
        %v1009 = vsub.f32 %v851, %v963
        %v1010 = vsub.f32 %v858, %v970
        %v1011 = vsub.f32 %v865, %v977
        %v1012 = vsub.f32 %v872, %v984
        %v1013 = vsub.f32 %v879, %v991
        %v1014 = vsub.f32 %v886, %v998
        %v1015 = vadd.f32 %v999, 1.0
        %v1016 = vadd.f32 %v1000, 1.0
        %v1017 = vadd.f32 %v1001, 1.0
        %v1018 = vadd.f32 %v1002, 1.0
        %v1019 = vadd.f32 %v1003, 1.0
        %v1020 = vadd.f32 %v1004, 1.0
        %v1021 = vadd.f32 %v1005, 1.0
        %v1022 = vadd.f32 %v1006, 1.0
        %v1023 = vadd.f32 %v1007, 1.0
        %v1024 = vadd.f32 %v1008, 1.0
        %v1025 = vadd.f32 %v1009, 1.0
        %v1026 = vadd.f32 %v1010, 1.0
        %v1027 = vadd.f32 %v1011, 1.0
        %v1028 = vadd.f32 %v1012, 1.0
        %v1029 = vadd.f32 %v1013, 1.0
        %v1030 = vadd.f32 %v1014, 1.0
        %v1031 = vmax.f32 %v1015, 0.0
        %v1032 = vmax.f32 %v1016, 0.0
        %v1033 = vmax.f32 %v1017, 0.0
        %v1034 = vmax.f32 %v1018, 0.0
        %v1035 = vmax.f32 %v1019, 0.0
        %v1036 = vmax.f32 %v1020, 0.0
        %v1037 = vmax.f32 %v1021, 0.0
        %v1038 = vmax.f32 %v1022, 0.0
        %v1039 = vmax.f32 %v1023, 0.0
        %v1040 = vmax.f32 %v1024, 0.0
        %v1041 = vmax.f32 %v1025, 0.0
        %v1042 = vmax.f32 %v1026, 0.0
        %v1043 = vmax.f32 %v1027, 0.0
        %v1044 = vmax.f32 %v1028, 0.0
        %v1045 = vmax.f32 %v1029, 0.0
        %v1046 = vmax.f32 %v1030, 0.0
        %v1047 = vsel %vm727, %v1031, 0.0
        %v1048 = vsel %vm728, %v1032, 0.0
        %v1049 = vsel %vm729, %v1033, 0.0
        %v1050 = vsel %vm730, %v1034, 0.0
        %v1051 = vsel %vm731, %v1035, 0.0
        %v1052 = vsel %vm732, %v1036, 0.0
        %v1053 = vsel %vm733, %v1037, 0.0
        %v1054 = vsel %vm734, %v1038, 0.0
        %v1055 = vsel %vm735, %v1039, 0.0
        %v1056 = vsel %vm736, %v1040, 0.0
        %v1057 = vsel %vm737, %v1041, 0.0
        %v1058 = vsel %vm738, %v1042, 0.0
        %v1059 = vsel %vm739, %v1043, 0.0
        %v1060 = vsel %vm740, %v1044, 0.0
        %v1061 = vsel %vm741, %v1045, 0.0
        %v1062 = vsel %vm742, %v1046, 0.0
        %vm1063 = vcmask 7168
        %v1064 = vsel %vm1063, %v1047, 0.0
        %v1065 = vsel %vm1063, %v1048, 0.0
        %v1066 = vadd.f32 %v1064, %v1065
        %v1067 = vsel %vm1063, %v1049, 0.0
        %v1068 = vadd.f32 %v1066, %v1067
        %v1069 = vsel %vm1063, %v1050, 0.0
        %v1070 = vadd.f32 %v1068, %v1069
        %v1071 = vsel %vm1063, %v1051, 0.0
        %v1072 = vadd.f32 %v1070, %v1071
        %v1073 = vsel %vm1063, %v1052, 0.0
        %v1074 = vadd.f32 %v1072, %v1073
        %v1075 = vsel %vm1063, %v1053, 0.0
        %v1076 = vadd.f32 %v1074, %v1075
        %v1077 = vsel %vm1063, %v1054, 0.0
        %v1078 = vadd.f32 %v1076, %v1077
        %v1079 = vsel %vm1063, %v1055, 0.0
        %v1080 = vadd.f32 %v1078, %v1079
        %v1081 = vsel %vm1063, %v1056, 0.0
        %v1082 = vadd.f32 %v1080, %v1081
        %v1083 = vsel %vm1063, %v1057, 0.0
        %v1084 = vadd.f32 %v1082, %v1083
        %v1085 = vsel %vm1063, %v1058, 0.0
        %v1086 = vadd.f32 %v1084, %v1085
        %v1087 = vsel %vm1063, %v1059, 0.0
        %v1088 = vadd.f32 %v1086, %v1087
        %v1089 = vsel %vm1063, %v1060, 0.0
        %v1090 = vadd.f32 %v1088, %v1089
        %v1091 = vsel %vm1063, %v1061, 0.0
        %v1092 = vadd.f32 %v1090, %v1091
        %v1093 = vsel %vm1063, %v1062, 0.0
        %v1094 = vadd.f32 %v1092, %v1093
        %1095 = vadd.xlane.f32.xlu0 %v1094
        %v1096 = vpop.xlane.xlu0 %1095
        %v1097 = vrot.slane %v1096, 4
        %v1098 = vadd.f32 %v1096, %v1097
        %v1099 = vrot.slane %v1098, 2
        %v1100 = vadd.f32 %v1098, %v1099
        %v1101 = vrot.slane %v1100, 1
        %v1102 = vadd.f32 %v1100, %v1101
        %s1103 = vtos %v1102
        %v1104 = vstv %s1103
        %v1105 = vadd.f32 %v1104, 0.0
        %1106 = vst [vmem:[%s289] sm:$0xff] %v1105
        %s1107 = sand.u32 %s109, 1
        %s1108 = scalar_lea.sflag [#allocation4], %s1107
        %s1109 = sand.u32 %s109, 1
        %s1110 = smul.addr %s1109, 8
        %s1111 = scalar_lea.vmem [#allocation8], %s1110
        // Predicated region
        $region45: #{tpu_custom_call.1} parent=31 // pred_check
          %p1112 = pneg %p119
        $region46: #{tpu_custom_call.1} parent=31 // pred_check_branch
          %1114 = sbr.rel (%p1112) target = $region48
        $region47: #{tpu_custom_call.1} parent=31 // pred_region
          %s1116 = ssub.s32 128, 128
          %1117 = vsyncadd %s1108, %s1116
          %s1118 = smul.addr %s23, 128
          %s1119 = scalar_lea.hbm %s3, %s1118
          %s1121 = sshll.u32 %s1111, 4
          %s1122 = int_to_ptr.vmem [resolvable:$true] %s1121
          %1124 = dma.vmem_to_hbm [thread:$0]  %s1122, 128, %s1119, %s1108
        $region48: #{tpu_custom_call.1} parent=31 // pred_fallthru
          _
      $region32: #{tpu_custom_call.1} parent=5 // pred_fallthru
        _
      %p1125 = scmp.le.s32.totalorder 2, %s18
      // Predicated region
      $region49: #{tpu_custom_call.1} parent=5 // pred_check
        %p1126 = pneg %p1125
      $region50: #{tpu_custom_call.1} parent=5 // pred_check_branch
        %1128 = sbr.rel (%p1126) target = $region52
      $region51: #{tpu_custom_call.1} parent=5 // pred_region
        %s1129 = ssub.s32 %s18, 2
        // Predicated region
        $region53: #{tpu_custom_call.1} parent=51 // pred_check
          %p1130 = pneg %p125
        $region54: #{tpu_custom_call.1} parent=51 // pred_check_branch
          %1132 = sbr.rel (%p1130) target = $region56
        $region55: #{tpu_custom_call.1} parent=51 // pred_region
          %s1133 = sand.u32 %s110, 1
          %s1134 = scalar_lea.sflag [#allocation4], %s1133
          %s1135 = sand.u32 %s110, 1
          %s1136 = smul.addr %s1135, 8
          %s1137 = scalar_lea.vmem [#allocation8], %s1136
          %1138 = dma.done %s1134, 128
        $region56: #{tpu_custom_call.1} parent=51 // pred_fallthru
          _
      $region52: #{tpu_custom_call.1} parent=5 // pred_fallthru
        _
    $region6: #{tpu_custom_call.1} parent=1 // loop_footer
      %s22 = sadd.s32 1, %s18
    $region7: #{tpu_custom_call.1} parent=1 // loop_footer_branch
      %17 = sbr.rel target = $region3
    $region8: #{tpu_custom_call.1} parent=1 // loop_exit
      _
    %1139 = vsyncpa [#allocation3], 1
    %s1140 = scalar_lea.sflag [#allocation3], 1
    %1141 = vsyncpa %s1140, 1
    %1142 = vsyncpa [#allocation6], 1
    %s1143 = scalar_lea.sflag [#allocation6], 1
    %1144 = vsyncpa %s1143, 1
    %1145 = vsyncpa [#allocation4], 1
    %s1146 = scalar_lea.sflag [#allocation4], 1
    %1147 = vsyncpa %s1146, 1

</llo_original>
